<compile_context>
chip_gen: v7x
topology: tpu7x:2x2x1
jax: 0.10.0
libtpu: 0.0.40
codegen_flags: <defaults>
</compile_context>

<pallas_src>
import jax
import jax.numpy as jnp
from jax.experimental import pallas as pl
from jax.experimental.pallas import tpu as pltpu

_LANES = 128
_BOXES_PER_ROW = _LANES // 4  # 32 boxes per 128-lane row (x, y, w, h interleaved)


def _iou_loss_kernel(b1_ref, b2_ref, o_ref):
    # b1_ref / b2_ref: (r_tile, 128) tiles of the flat [N*4] coordinate stream:
    #   lane 4k = x, 4k+1 = y, 4k+2 = w, 4k+3 = h of box k within the row.
    # o_ref: (8, 128) resident partial-sum block for this parallel slice.
    @pl.when(pl.program_id(1) == 0)
    def _():
        o_ref[...] = jnp.zeros_like(o_ref)

    a = b1_ref[...]
    b = b2_ref[...]

    # pltpu.roll matches jnp.roll: out[..., i] = in[..., (i - shift) % 128].
    # shift = 128 - d  =>  out[i] = in[i + d]  ("fetch d lanes ahead").
    ahead1 = lambda t: pltpu.roll(t, shift=_LANES - 1, axis=1)
    ahead2 = lambda t: pltpu.roll(t, shift=_LANES - 2, axis=1)

    # Valid per-box results end up in lanes 4k; other lanes hold cross-box
    # garbage and are masked out right before accumulation.
    sum_a = a + ahead2(a)              # lane 4k: x1+w1, lane 4k+1: y1+h1
    sum_b = b + ahead2(b)
    lt = jnp.maximum(a, b)             # lane 4k: max(x1,x2), 4k+1: max(y1,y2)
    rb = jnp.minimum(sum_a, sum_b)     # lane 4k: min(x1+w1, x2+w2), 4k+1: ...
    d = rb - lt                        # NOT clamped, matching the PyTorch forward
    inter = d * ahead1(d)              # lane 4k: dx * dy

    areas = ahead2(a * ahead1(a) + b * ahead1(b))  # lane 4k: w1*h1 + w2*h2
    denom = areas - inter

    # EUP approx reciprocal + 2 Newton-Raphson refinements -> f32-accurate 1/denom
    # while the reciprocal itself issues on the otherwise-idle EUP slot.
    r = pl.reciprocal(denom, approx=True)
    r = r * (2.0 - denom * r)
    r = r * (2.0 - denom * r)
    iou = inter * r

    lane = jax.lax.broadcasted_iota(jnp.int32, iou.shape, 1)
    iou = jnp.where((lane & 3) == 0, iou, 0.0)     # keep one lane per box

    # Tree-reduce the tile to a single (8, 128) vreg and accumulate into the
    # resident output block (one vreg store per step instead of r_tile/8).
    o_ref[...] += jnp.sum(iou.reshape(-1, 8, _LANES), axis=0)


def _cdiv(a, b):
    return -(-a // b)


def _round_up(x, m):
    return _cdiv(x, m) * m


def iou_loss(boxes1, boxes2, *, tile_boxes=None, num_parallel=2):
    """boxes1, boxes2: float32 [N, 4] arrays (x, y, w, h).  Returns scalar loss.

    tile_boxes: boxes per input per grid step (auto: 262144 on v6e/v7x -> ~8 MiB/step,
    131072 elsewhere -> ~4 MiB/step, safely inside each generation's default scoped VMEM
    with double buffering).  num_parallel: leading 'parallel' grid axis (2 uses both v7x
    TensorCores; sequential and harmless on 1-TC chips).
    """
    assert boxes1.shape == boxes2.shape and boxes1.ndim == 2 and boxes1.shape[1] == 4
    n = boxes1.shape[0]

    if tile_boxes is None:
        try:
            kind = jax.devices()[0].device_kind.lower()
        except Exception:  # pragma: no cover - defensive
            kind = ""
        tile_boxes = 262144 if ("v7" in kind or "v6" in kind) else 131072

    rows_needed = _cdiv(n * 4, _LANES)
    tile_rows = max(_round_up(tile_boxes // _BOXES_PER_ROW, 8), 8)
    inner_steps = max(_cdiv(rows_needed, num_parallel * tile_rows), 1)
    r_tile = _round_up(_cdiv(rows_needed, num_parallel * inner_steps), 8)
    rows_total = num_parallel * inner_steps * r_tile
    pad_boxes = rows_total * _BOXES_PER_ROW - n

    def _flat(x):
        flat = x.astype(jnp.float32).reshape(-1)   # free: contiguous [N,4] -> [4N]
        pad = rows_total * _LANES - flat.shape[0]
        if pad:
            # Pad with degenerate x=y=w=h=1 boxes: each contributes exactly 1.0 to
            # the IoU sum, which is subtracted below (no hot-path validity mask).
            flat = jnp.pad(flat, (0, pad), constant_values=1.0)
        return flat.reshape(rows_total, _LANES)

    b1 = _flat(boxes1)
    b2 = _flat(boxes2)

    box_spec = pl.BlockSpec((r_tile, _LANES), lambda c, i: (c * inner_steps + i, 0))

    partials = pl.pallas_call(
        _iou_loss_kernel,
        out_shape=jax.ShapeDtypeStruct((num_parallel * 8, _LANES), jnp.float32),
        grid_spec=pltpu.PrefetchScalarGridSpec(
            num_scalar_prefetch=0,
            grid=(num_parallel, inner_steps),
            in_specs=[box_spec, box_spec],
            out_specs=pl.BlockSpec((8, _LANES), lambda c, i: (c, 0)),
        ),
        compiler_params=pltpu.CompilerParams(
            dimension_semantics=("parallel", "arbitrary"),
        ),
    )(b1, b2)

    # Tiny epilogue on a (num_parallel*8, 128) array: remove the exact 1.0-per-pad-box
    # contribution, take the mean over the true N, and apply -log.
    total = jnp.sum(partials)
    mean_iou = (total - jnp.float32(pad_boxes)) / jnp.float32(n)
    return -jnp.log(mean_iou)


def iou_loss_ref(boxes1, boxes2):
    """Pure-JAX reference matching the PyTorch forward exactly."""
    areas1 = boxes1[:, 2] * boxes1[:, 3]
    areas2 = boxes2[:, 2] * boxes2[:, 3]
    lt = jnp.maximum(boxes1[:, :2], boxes2[:, :2])
    rb = jnp.minimum(boxes1[:, 2:] + boxes1[:, :2], boxes2[:, 2:] + boxes2[:, :2])
    inter = rb - lt
    inter = inter[:, 0] * inter[:, 1]
    iou = inter / (areas1 + areas2 - inter)
    return -jnp.log(iou.mean())


def _make_boxes(key, n):
    k1, k2, k3 = jax.random.split(key, 3)
    xy = jax.random.uniform(k1, (n, 2), jnp.float32, 0.0, 1.0)
    wh = jax.random.uniform(k2, (n, 2), jnp.float32, 0.5, 1.5)
    boxes1 = jnp.concatenate([xy, wh], axis=1)  # [N, 4] (x, y, w, h)
    boxes2 = boxes1 + 0.05 * jax.random.normal(k3, (n, 4), jnp.float32)
    return boxes1, boxes2


if __name__ == "__main__":
    key = jax.random.PRNGKey(0)
    k_a, k_b, k_c = jax.random.split(key, 3)

    # Case 1: small N, not a multiple of 32/128 -> exercises the 1.0-padded tail.
    boxes1, boxes2 = _make_boxes(k_a, 300)
    loss = iou_loss(boxes1, boxes2)
    jax.block_until_ready(loss)
    ref = iou_loss_ref(boxes1, boxes2)
    assert jnp.allclose(loss, ref, rtol=1e-5, atol=1e-5), (loss, ref)

    # Case 2: tiny tiles -> several reduction steps per core + padded tail.
    boxes1b, boxes2b = _make_boxes(k_b, 3000)
    loss2 = iou_loss(boxes1b, boxes2b, tile_boxes=1024)
    jax.block_until_ready(loss2)
    ref2 = iou_loss_ref(boxes1b, boxes2b)
    assert jnp.allclose(loss2, ref2, rtol=1e-5, atol=1e-5), (loss2, ref2)

    # Case 3: exactly tile-aligned N -> no-padding path.
    boxes1c, boxes2c = _make_boxes(k_c, 2048)
    loss3 = iou_loss(boxes1c, boxes2c, tile_boxes=1024)
    jax.block_until_ready(loss3)
    ref3 = iou_loss_ref(boxes1c, boxes2c)
    assert jnp.allclose(loss3, ref3, rtol=1e-5, atol=1e-5), (loss3, ref3)

    print("KERNEL_OK")
</pallas_src>

<mosaic_0001>
module attributes {stable_mosaic.version = 11 : i64} {
  func.func @_iou_loss_kernel(%arg0: i32, %arg1: i32, %arg2: memref<8x128xf32, #tpu.memory_space<vmem>>, %arg3: memref<8x128xf32, #tpu.memory_space<vmem>>, %arg4: memref<8x128xf32, #tpu.memory_space<vmem>>) attributes {dimension_semantics = [#tpu.dimension_semantics<parallel>, #tpu.dimension_semantics<arbitrary>], iteration_bounds = array<i64: 2, 1>, scalar_prefetch = 0 : i64, scratch_operands = 0 : i64, tpu.core_type = #tpu.core_type<tc>, window_params = [{transform_indices = @transform_0, window_bounds = array<i64: 8, 128>}, {transform_indices = @transform_1, window_bounds = array<i64: 8, 128>}, {transform_indices = @transform_2, window_bounds = array<i64: 8, 128>}]} {
    %c0_i32 = arith.constant 0 : i32
    %0 = arith.cmpi eq, %arg1, %c0_i32 : i32
    %1 = arith.extui %0 : i1 to i32
    %c0_i32_0 = arith.constant 0 : i32
    %2 = arith.cmpi ne, %1, %c0_i32_0 : i32
    scf.if %2 {
      %cst_16 = arith.constant 0.000000e+00 : f32
      %43 = vector.broadcast %cst_16 : f32 to vector<8x128xf32>
      %c0_17 = arith.constant 0 : index
      %c0_18 = arith.constant 0 : index
      %44 = vector.load %arg4[%c0_17, %c0_18] : memref<8x128xf32, #tpu.memory_space<vmem>>, vector<8x128xf32>
      tpu.vector_store %arg4[%c0_17, %c0_18], %43 {strides = array<i32>} : memref<8x128xf32, #tpu.memory_space<vmem>>, vector<8x128xf32>,
    } else {
    }
    %c0 = arith.constant 0 : index
    %c0_1 = arith.constant 0 : index
    %3 = vector.load %arg2[%c0, %c0_1] : memref<8x128xf32, #tpu.memory_space<vmem>>, vector<8x128xf32>
    %c0_2 = arith.constant 0 : index
    %c0_3 = arith.constant 0 : index
    %4 = vector.load %arg3[%c0_2, %c0_3] : memref<8x128xf32, #tpu.memory_space<vmem>>, vector<8x128xf32>
    %c126_i32 = arith.constant 126 : i32
    %5 = tpu.dynamic_rotate %3 by %c126_i32 dim 1 : vector<8x128xf32>, i32 -> vector<8x128xf32>
    %6 = arith.addf %3, %5 : vector<8x128xf32>
    %c126_i32_4 = arith.constant 126 : i32
    %7 = tpu.dynamic_rotate %4 by %c126_i32_4 dim 1 : vector<8x128xf32>, i32 -> vector<8x128xf32>
    %8 = arith.addf %4, %7 : vector<8x128xf32>
    %9 = arith.maximumf %3, %4 : vector<8x128xf32>
    %10 = arith.minimumf %6, %8 : vector<8x128xf32>
    %11 = arith.subf %10, %9 : vector<8x128xf32>
    %c127_i32 = arith.constant 127 : i32
    %12 = tpu.dynamic_rotate %11 by %c127_i32 dim 1 : vector<8x128xf32>, i32 -> vector<8x128xf32>
    %13 = arith.mulf %11, %12 : vector<8x128xf32>
    %c127_i32_5 = arith.constant 127 : i32
    %14 = tpu.dynamic_rotate %3 by %c127_i32_5 dim 1 : vector<8x128xf32>, i32 -> vector<8x128xf32>
    %15 = arith.mulf %3, %14 : vector<8x128xf32>
    %c127_i32_6 = arith.constant 127 : i32
    %16 = tpu.dynamic_rotate %4 by %c127_i32_6 dim 1 : vector<8x128xf32>, i32 -> vector<8x128xf32>
    %17 = arith.mulf %4, %16 : vector<8x128xf32>
    %18 = arith.addf %15, %17 : vector<8x128xf32>
    %c126_i32_7 = arith.constant 126 : i32
    %19 = tpu.dynamic_rotate %18 by %c126_i32_7 dim 1 : vector<8x128xf32>, i32 -> vector<8x128xf32>
    %20 = arith.subf %19, %13 : vector<8x128xf32>
    %21 = tpu.reciprocal %20 {approx = true} : vector<8x128xf32> -> vector<8x128xf32>
    %22 = arith.mulf %20, %21 : vector<8x128xf32>
    %cst = arith.constant 2.000000e+00 : f32
    %23 = vector.broadcast %cst : f32 to vector<8x128xf32>
    %24 = arith.subf %23, %22 : vector<8x128xf32>
    %25 = arith.mulf %21, %24 : vector<8x128xf32>
    %26 = arith.mulf %20, %25 : vector<8x128xf32>
    %cst_8 = arith.constant 2.000000e+00 : f32
    %27 = vector.broadcast %cst_8 : f32 to vector<8x128xf32>
    %28 = arith.subf %27, %26 : vector<8x128xf32>
    %29 = arith.mulf %25, %28 : vector<8x128xf32>
    %30 = arith.mulf %13, %29 : vector<8x128xf32>
    %31 = tpu.iota {dimensions = array<i32: 1>} : vector<8x128xi32>
    %c3_i32 = arith.constant 3 : i32
    %32 = vector.broadcast %c3_i32 : i32 to vector<8x128xi32>
    %33 = arith.andi %31, %32 : vector<8x128xi32>
    %c0_i32_9 = arith.constant 0 : i32
    %34 = vector.broadcast %c0_i32_9 : i32 to vector<8x128xi32>
    %35 = arith.cmpi eq, %33, %34 : vector<8x128xi32>
    %cst_10 = arith.constant 0.000000e+00 : f32
    %36 = vector.broadcast %cst_10 : f32 to vector<8x128xf32>
    %37 = arith.select %35, %30, %36 : vector<8x128xi1>, vector<8x128xf32>
    %c0_11 = arith.constant 0 : index
    %c0_12 = arith.constant 0 : index
    %38 = vector.load %arg4[%c0_11, %c0_12] : memref<8x128xf32, #tpu.memory_space<vmem>>, vector<8x128xf32>
    %39 = vector.shape_cast %37 : vector<8x128xf32> to vector<1x8x128xf32>
    %cst_13 = arith.constant dense<0.000000e+00> : vector<8x128xf32>
    %40 = vector.multi_reduction <add>, %39, %cst_13 [0] : vector<1x8x128xf32> to vector<8x128xf32>
    %41 = arith.addf %38, %40 : vector<8x128xf32>
    %c0_14 = arith.constant 0 : index
    %c0_15 = arith.constant 0 : index
    %42 = vector.load %arg4[%c0_14, %c0_15] : memref<8x128xf32, #tpu.memory_space<vmem>>, vector<8x128xf32>
    tpu.vector_store %arg4[%c0_14, %c0_15], %41 {strides = array<i32>} : memref<8x128xf32, #tpu.memory_space<vmem>>, vector<8x128xf32>,
    return
  }
  func.func @transform_0(%arg0: i32, %arg1: i32) -> (i32, i32) {
    %c1_i32 = arith.constant 1 : i32
    %0 = arith.muli %arg0, %c1_i32 : i32
    %1 = arith.addi %0, %arg1 : i32
    %c0_i32 = arith.constant 0 : i32
    %c0_i32_0 = arith.constant 0 : i32
    return %1, %c0_i32 : i32, i32
  }
  func.func @transform_1(%arg0: i32, %arg1: i32) -> (i32, i32) {
    %c1_i32 = arith.constant 1 : i32
    %0 = arith.muli %arg0, %c1_i32 : i32
    %1 = arith.addi %0, %arg1 : i32
    %c0_i32 = arith.constant 0 : i32
    %c0_i32_0 = arith.constant 0 : i32
    return %1, %c0_i32 : i32, i32
  }
  func.func @transform_2(%arg0: i32, %arg1: i32) -> (i32, i32) {
    %c0_i32 = arith.constant 0 : i32
    %c0_i32_0 = arith.constant 0 : i32
    return %arg0, %c0_i32 : i32, i32
  }
}

</mosaic_0001>

<llo_original>
// kernel: tpu_custom_call.1
$region0: #{tpu_custom_call.1}
  #allocation0 [shape = 'u32[]', space=smem, size = 0x4, offset = 0x4, fixed_abs, tag = 'smem constant byte address 0x4 - core index']
  #allocation1 [shape = 'u32[144,128]{1,0:T(1,128)}', space=vmem, size = 0x12000, scoped, tag = 'internal scratch']
  %s0 = inlined_call_operand.hbm [shape: f32[16,128], index: 0, kind: input, shape index: {}]
  %s1 = inlined_call_operand.hbm [shape: f32[16,128], index: 1, kind: input, shape index: {}]
  %s2 = inlined_call_operand.hbm [shape: f32[16,128], index: 2, kind: output, shape index: {}]
  %s3 = sld [smem:[#allocation0]]
  $region53: #{tpu_custom_call.1} parent=0
    _
  %s5 = ssub.s32 1, %s3
  %s6 = scalar_select 0, %s5, %s3
  $region1: #{tpu_custom_call.1} parent=0
    #allocation2 [shape = 'u8[8192]{0}', space=vmem, size = 0x2000, scoped, tag = 'input window, operand 0']
    #allocation3 [shape = 's32[2]{0}', space=sflag, size = 0x8, scoped, tag = 'scoped memory for tpu_custom_call.1']
    #allocation4 [shape = 's32[2]{0}', space=sflag, size = 0x8, scoped, tag = 'scoped memory for tpu_custom_call.1']
    #allocation5 [shape = 'u8[8192]{0}', space=vmem, size = 0x2000, scoped, tag = 'input window, operand 1']
    #allocation6 [shape = 's32[2]{0}', space=sflag, size = 0x8, scoped, tag = 'scoped memory for tpu_custom_call.1']
    #allocation7 [shape = 'u8[8192]{0}', space=vmem, size = 0x2000, scoped, tag = 'output window, operand 0']
    %7 = vsyncpa [#allocation3], 0
    %s8 = scalar_lea.sflag [#allocation3], 1
    %9 = vsyncpa %s8, 0
    %10 = vsyncpa [#allocation6], 0
    %s11 = scalar_lea.sflag [#allocation6], 1
    %12 = vsyncpa %s11, 0
    %13 = vsyncpa [#allocation4], 0
    %s14 = scalar_lea.sflag [#allocation4], 1
    %15 = vsyncpa %s14, 0
    loop: start=0, step=1, limit=4
    $region2: #{tpu_custom_call.1} parent=1 // loop_pre_header
      _
    $region3: #{tpu_custom_call.1} parent=1 // loop_header
      %s17 = sphi 0, %s21
      %p18 = scmp.ge.s32.totalorder %s17, 4
      %s24 = sphi 0, %s36
      %s25 = sphi 0, %s32
      %s26 = sphi 0, %s24
      %s27 = sphi 0, %s25
      %s28 = sphi 0, %s26
      %s29 = sphi 0, %s27
      %s41 = sphi 0, %s43
      %s44 = sphi 0, %s41
      %s45 = sphi 0, %s44
      %s61 = sphi 0, %s45
      %s69 = sphi 0, %s71
      %s72 = sphi 0, %s69
      %s73 = sphi 0, %s72
      %s89 = sphi 0, %s73
      %s95 = sphi 0, %s97
      %s98 = sphi 0, %s95
      %s99 = sphi 0, %s98
      %s115 = sphi 0, %s99
    $region4: #{tpu_custom_call.1} parent=1 // loop_header_branch
      %20 = sbr.rel (%p18) target = $region8
    $region5: #{tpu_custom_call.1} parent=1 // loop_body
      %s22 = ssub.s32 %s17, 1
      %s23 = ssub.s32 %s17, 2
      %s30 = sadd.s32 1, %s25
      %p31 = scmp.ge.s32.totalorder %s30, 1
      %s32 = scalar_select %p31, 0, %s30
      %s33 = sadd.s32 1, %s24
      %s34 = scalar_select %p31, %s33, %s24
      %p35 = scmp.ge.s32.totalorder %s34, 2
      %s36 = scalar_select %p35, 0, %s34
      %s37 = sadd.s32 %s24, %s25
      %s38 = sadd.s32 %s36, %s32
      %s39 = ssub.s32 %s37, %s38
      %p40 = scmp.eq.s32.totalorder %s39, 0
      %s42 = sadd.s32 %s41, 1
      %s43 = scalar_select %p40, %s41, %s42
      %p46 = pneg %p40
      %p47 = scmp.eq.s32.totalorder %s17, 1
      %p48 = por %p46, %p47
      %p49 = scmp.ne.s32.totalorder %s41, %s44
      %p50 = scmp.eq.s32.totalorder %s17, 0
      %p51 = por %p49, %p50
      %p52 = scmp.ne.s32.totalorder %s41, %s44
      %p53 = scmp.eq.s32.totalorder %s22, 1
      %p54 = por %p52, %p53
      %p55 = scmp.ne.s32.totalorder %s44, %s45
      %p56 = scmp.eq.s32.totalorder %s22, 0
      %p57 = por %p55, %p56
      %p58 = scmp.ne.s32.totalorder %s44, %s45
      %p59 = scmp.eq.s32.totalorder %s23, 1
      %p60 = por %p58, %p59
      %p62 = scmp.ne.s32.totalorder %s45, %s61
      %p63 = scmp.eq.s32.totalorder %s23, 0
      %p64 = por %p62, %p63
      %s65 = sadd.s32 %s24, %s25
      %s66 = sadd.s32 %s36, %s32
      %s67 = ssub.s32 %s65, %s66
      %p68 = scmp.eq.s32.totalorder %s67, 0
      %s70 = sadd.s32 %s69, 1
      %s71 = scalar_select %p68, %s69, %s70
      %p74 = pneg %p68
      %p75 = scmp.eq.s32.totalorder %s17, 1
      %p76 = por %p74, %p75
      %p77 = scmp.ne.s32.totalorder %s69, %s72
      %p78 = scmp.eq.s32.totalorder %s17, 0
      %p79 = por %p77, %p78
      %p80 = scmp.ne.s32.totalorder %s69, %s72
      %p81 = scmp.eq.s32.totalorder %s22, 1
      %p82 = por %p80, %p81
      %p83 = scmp.ne.s32.totalorder %s72, %s73
      %p84 = scmp.eq.s32.totalorder %s22, 0
      %p85 = por %p83, %p84
      %p86 = scmp.ne.s32.totalorder %s72, %s73
      %p87 = scmp.eq.s32.totalorder %s23, 1
      %p88 = por %p86, %p87
      %p90 = scmp.ne.s32.totalorder %s73, %s89
      %p91 = scmp.eq.s32.totalorder %s23, 0
      %p92 = por %p90, %p91
      %s93 = ssub.s32 %s24, %s36
      %p94 = scmp.eq.s32.totalorder %s93, 0
      %s96 = sadd.s32 %s95, 1
      %s97 = scalar_select %p94, %s95, %s96
      %p100 = pneg %p94
      %p101 = scmp.eq.s32.totalorder %s17, 1
      %p102 = por %p100, %p101
      %p103 = scmp.ne.s32.totalorder %s95, %s98
      %p104 = scmp.eq.s32.totalorder %s17, 0
      %p105 = por %p103, %p104
      %p106 = scmp.ne.s32.totalorder %s95, %s98
      %p107 = scmp.eq.s32.totalorder %s22, 1
      %p108 = por %p106, %p107
      %p109 = scmp.ne.s32.totalorder %s98, %s99
      %p110 = scmp.eq.s32.totalorder %s22, 0
      %p111 = por %p109, %p110
      %p112 = scmp.ne.s32.totalorder %s98, %s99
      %p113 = scmp.eq.s32.totalorder %s23, 1
      %p114 = por %p112, %p113
      %p116 = scmp.ne.s32.totalorder %s99, %s115
      %p117 = scmp.eq.s32.totalorder %s23, 0
      %p118 = por %p116, %p117
      %p119 = scmp.le.s32.totalorder 1, %s17
      %p120 = scmp.lt.s32.totalorder %s17, 3
      %p121 = pnand %p119, %p120
      %p122 = pneg %p121
      // Predicated region
      $region9: #{tpu_custom_call.1} parent=5 // pred_check
        _
      $region10: #{tpu_custom_call.1} parent=5 // pred_check_branch
        %124 = sbr.rel (%p121) target = $region12
      $region11: #{tpu_custom_call.1} parent=5 // pred_region
        %s125 = ssub.s32 %s17, 1
      $region12: #{tpu_custom_call.1} parent=5 // pred_fallthru
        _
      %p126 = scmp.lt.s32.totalorder %s17, 2
      // Predicated region
      $region13: #{tpu_custom_call.1} parent=5 // pred_check
        %p127 = pneg %p126
      $region14: #{tpu_custom_call.1} parent=5 // pred_check_branch
        %129 = sbr.rel (%p127) target = $region16
      $region15: #{tpu_custom_call.1} parent=5 // pred_region
        // Predicated region
        $region17: #{tpu_custom_call.1} parent=15 // pred_check
          %p130 = pneg %p51
        $region18: #{tpu_custom_call.1} parent=15 // pred_check_branch
          %132 = sbr.rel (%p130) target = $region20
        $region19: #{tpu_custom_call.1} parent=15 // pred_region
          %s133 = sand.u32 %s41, 1
          %s134 = scalar_lea.sflag [#allocation3], %s133
          %s135 = sand.u32 %s41, 1
          %s136 = smul.addr %s135, 8
          %s137 = scalar_lea.vmem [#allocation2], %s136
          %s138 = sadd.s32 %s24, %s25
          %s140 = ssub.s32 128, 128
          %141 = vsyncadd %s134, %s140
          %s142 = smul.addr %s138, 128
          %s143 = scalar_lea.hbm %s0, %s142
          %s145 = sshll.u32 %s137, 4
          %s146 = int_to_ptr.vmem [resolvable:$true] %s145
          %148 = dma.hbm_to_vmem [thread:$0]  %s143, 128, %s146, %s134
        $region20: #{tpu_custom_call.1} parent=15 // pred_fallthru
          _
        // Predicated region
        $region21: #{tpu_custom_call.1} parent=15 // pred_check
          %p149 = pneg %p79
        $region22: #{tpu_custom_call.1} parent=15 // pred_check_branch
          %151 = sbr.rel (%p149) target = $region24
        $region23: #{tpu_custom_call.1} parent=15 // pred_region
          %s152 = sand.u32 %s69, 1
          %s153 = scalar_lea.sflag [#allocation6], %s152
          %s154 = sand.u32 %s69, 1
          %s155 = smul.addr %s154, 8
          %s156 = scalar_lea.vmem [#allocation5], %s155
          %s157 = sadd.s32 %s24, %s25
          %s159 = ssub.s32 128, 128
          %160 = vsyncadd %s153, %s159
          %s161 = smul.addr %s157, 128
          %s162 = scalar_lea.hbm %s1, %s161
          %s164 = sshll.u32 %s156, 4
          %s165 = int_to_ptr.vmem [resolvable:$true] %s164
          %167 = dma.hbm_to_vmem [thread:$0]  %s162, 128, %s165, %s153
        $region24: #{tpu_custom_call.1} parent=15 // pred_fallthru
          _
      $region16: #{tpu_custom_call.1} parent=5 // pred_fallthru
        _
      %p168 = scmp.le.s32.totalorder 1, %s17
      %p169 = scmp.lt.s32.totalorder %s17, 3
      %p170 = pnand %p168, %p169
      %p171 = pneg %p170
      // Predicated region
      $region25: #{tpu_custom_call.1} parent=5 // pred_check
        _
      $region26: #{tpu_custom_call.1} parent=5 // pred_check_branch
        %173 = sbr.rel (%p170) target = $region28
      $region27: #{tpu_custom_call.1} parent=5 // pred_region
        %s174 = ssub.s32 %s17, 1
        %s175 = sand.u32 %s44, 1
        %s176 = scalar_lea.sflag [#allocation3], %s175
        %s177 = sand.u32 %s44, 1
        %s178 = smul.addr %s177, 8
        %s179 = scalar_lea.vmem [#allocation2], %s178
        // Predicated region
        $region29: #{tpu_custom_call.1} parent=27 // pred_check
          %p180 = pneg %p57
        $region30: #{tpu_custom_call.1} parent=27 // pred_check_branch
          %182 = sbr.rel (%p180) target = $region32
        $region31: #{tpu_custom_call.1} parent=27 // pred_region
          %183 = dma.done %s176, 128
        $region32: #{tpu_custom_call.1} parent=27 // pred_fallthru
          _
        %s184 = sand.u32 %s72, 1
        %s185 = scalar_lea.sflag [#allocation6], %s184
        %s186 = sand.u32 %s72, 1
        %s187 = smul.addr %s186, 8
        %s188 = scalar_lea.vmem [#allocation5], %s187
        // Predicated region
        $region33: #{tpu_custom_call.1} parent=27 // pred_check
          %p189 = pneg %p85
        $region34: #{tpu_custom_call.1} parent=27 // pred_check_branch
          %191 = sbr.rel (%p189) target = $region36
        $region35: #{tpu_custom_call.1} parent=27 // pred_region
          %192 = dma.done %s185, 128
        $region36: #{tpu_custom_call.1} parent=27 // pred_fallthru
          _
        %s193 = sand.u32 %s44, 1
        %s194 = scalar_lea.sflag [#allocation3], %s193
        %s195 = sand.u32 %s44, 1
        %s196 = smul.addr %s195, 8
        %s197 = scalar_lea.vmem [#allocation2], %s196
        %p198 = pneg %p57
        %p199 = pneg %p54
        %s200 = sand.u32 %s72, 1
        %s201 = scalar_lea.sflag [#allocation6], %s200
        %s202 = sand.u32 %s72, 1
        %s203 = smul.addr %s202, 8
        %s204 = scalar_lea.vmem [#allocation5], %s203
        %p205 = pneg %p85
        %p206 = pneg %p82
        %p207 = pneg %p111
        %p208 = pneg %p108
        %s209 = sand.u32 %s98, 1
        %s210 = scalar_lea.sflag [#allocation4], %s209
        %s211 = sand.u32 %s98, 1
        %s212 = smul.addr %s211, 8
        %s213 = scalar_lea.vmem [#allocation7], %s212
        %s214 = sadd.s32 %s26, %s27
        %s215 = sadd.s32 %s26, %s27
        %p216 = scmp.eq.s32.totalorder %s27, 0
        // Predicated region
        $region37: #{tpu_custom_call.1} parent=27 // pred_check
          %p217 = pneg %p216
        $region38: #{tpu_custom_call.1} parent=27 // pred_check_branch
          %219 = sbr.rel (%p217) target = $region40
        $region39: #{tpu_custom_call.1} parent=27 // pred_region
          %220 = vst [vmem:[%s213] sm:$0xff] 0.0
        $region40: #{tpu_custom_call.1} parent=27 // pred_fallthru
          _
        %v221 = vld [vmem:[%s179] sm:$0xff]
        %v222 = vld [vmem:[%s188] sm:$0xff]
        %223 = vrot.lane.b32.xlu0 %v221, 126
        %v224 = vpop.permute.xlu0 %223
        %v225 = vadd.f32 %v221, %v224
        %226 = vrot.lane.b32.xlu0 %v222, 126
        %v227 = vpop.permute.xlu0 %226
        %v228 = vadd.f32 %v222, %v227
        %v229 = vmax.f32 %v221, %v222
        %v230 = vmin.f32 %v225, %v228
        %v231 = vsub.f32 %v230, %v229
        %232 = vrot.lane.b32.xlu0 %v231, 127
        %v233 = vpop.permute.xlu0 %232
        %v234 = vmul.f32 %v231, %v233
        %235 = vrot.lane.b32.xlu0 %v221, 127
        %v236 = vpop.permute.xlu0 %235
        %v237 = vmul.f32 %v221, %v236
        %238 = vrot.lane.b32.xlu0 %v222, 127
        %v239 = vpop.permute.xlu0 %238
        %v240 = vmul.f32 %v222, %v239
        %v241 = vadd.f32 %v237, %v240
        %242 = vrot.lane.b32.xlu0 %v241, 126
        %v243 = vpop.permute.xlu0 %242
        %v244 = vsub.f32 %v243, %v234
        %v245 = vrcp.pop %v244
        %v246 = vmul.f32 %v244, %v245
        %v247 = vsub.f32 2.0, %v246
        %v248 = vmul.f32 %v245, %v247
        %v249 = vmul.f32 %v244, %v248
        %v250 = vsub.f32 2.0, %v249
        %v251 = vmul.f32 %v248, %v250
        %v252 = vmul.f32 %v234, %v251
        %v253 = vlaneseq
        %v254 = vand.u32 %v253, 127
        %v255 = vand.u32 %v254, 3
        %vm256 = vcmp.eq.s32.totalorder %v255, 0
        %v257 = vsel %vm256, %v252, 0.0
        %v258 = vld [vmem:[%s213] sm:$0xff]
        %v259 = vadd.f32 %v257, 0.0
        %v260 = vadd.f32 %v258, %v259
        %261 = vst [vmem:[%s213] sm:$0xff] %v260
        %s262 = sand.u32 %s98, 1
        %s263 = scalar_lea.sflag [#allocation4], %s262
        %s264 = sand.u32 %s98, 1
        %s265 = smul.addr %s264, 8
        %s266 = scalar_lea.vmem [#allocation7], %s265
        // Predicated region
        $region41: #{tpu_custom_call.1} parent=27 // pred_check
          %p267 = pneg %p108
        $region42: #{tpu_custom_call.1} parent=27 // pred_check_branch
          %269 = sbr.rel (%p267) target = $region44
        $region43: #{tpu_custom_call.1} parent=27 // pred_region
          %s271 = ssub.s32 128, 128
          %272 = vsyncadd %s263, %s271
          %s273 = smul.addr %s26, 128
          %s274 = scalar_lea.hbm %s2, %s273
          %s276 = sshll.u32 %s266, 4
          %s277 = int_to_ptr.vmem [resolvable:$true] %s276
          %279 = dma.vmem_to_hbm [thread:$0]  %s277, 128, %s274, %s263
        $region44: #{tpu_custom_call.1} parent=27 // pred_fallthru
          _
      $region28: #{tpu_custom_call.1} parent=5 // pred_fallthru
        _
      %p280 = scmp.le.s32.totalorder 2, %s17
      // Predicated region
      $region45: #{tpu_custom_call.1} parent=5 // pred_check
        %p281 = pneg %p280
      $region46: #{tpu_custom_call.1} parent=5 // pred_check_branch
        %283 = sbr.rel (%p281) target = $region48
      $region47: #{tpu_custom_call.1} parent=5 // pred_region
        %s284 = ssub.s32 %s17, 2
        // Predicated region
        $region49: #{tpu_custom_call.1} parent=47 // pred_check
          %p285 = pneg %p114
        $region50: #{tpu_custom_call.1} parent=47 // pred_check_branch
          %287 = sbr.rel (%p285) target = $region52
        $region51: #{tpu_custom_call.1} parent=47 // pred_region
          %s288 = sand.u32 %s99, 1
          %s289 = scalar_lea.sflag [#allocation4], %s288
          %s290 = sand.u32 %s99, 1
          %s291 = smul.addr %s290, 8
          %s292 = scalar_lea.vmem [#allocation7], %s291
          %293 = dma.done %s289, 128
        $region52: #{tpu_custom_call.1} parent=47 // pred_fallthru
          _
      $region48: #{tpu_custom_call.1} parent=5 // pred_fallthru
        _
    $region6: #{tpu_custom_call.1} parent=1 // loop_footer
      %s21 = sadd.s32 1, %s17
    $region7: #{tpu_custom_call.1} parent=1 // loop_footer_branch
      %16 = sbr.rel target = $region3
    $region8: #{tpu_custom_call.1} parent=1 // loop_exit
      _
    %294 = vsyncpa [#allocation3], 1
    %s295 = scalar_lea.sflag [#allocation3], 1
    %296 = vsyncpa %s295, 1
    %297 = vsyncpa [#allocation6], 1
    %s298 = scalar_lea.sflag [#allocation6], 1
    %299 = vsyncpa %s298, 1
    %300 = vsyncpa [#allocation4], 1
    %s301 = scalar_lea.sflag [#allocation4], 1
    %302 = vsyncpa %s301, 1

</llo_original>
